<compile_context>
chip_gen: v7x
topology: tpu7x:2x2x1
jax: 0.10.0
libtpu: 0.0.40
codegen_flags: <defaults>
</compile_context>

<pallas_src>
import jax
import jax.numpy as jnp
from jax import lax
from jax.experimental import pallas as pl
from jax.experimental.pallas import tpu as pltpu

# ------------------------- problem sizes -------------------------
N = 2            # batch
C = 4            # t_size (in == out channels)
H = 16           # image rows
W = 16           # image cols == n_step (LayerNorm axis)
NCH = N * C * H  # 128 = lane axis (n, c, h)
EPS = 1e-5       # PyTorch LayerNorm default


# ------------------------- Pallas kernel -------------------------
def conv_block_kernel(x_ref, w1_ref, b1_ref, w2_ref, b2_ref, w3_ref, b3_ref,
                      g_ref, bt_ref, o_ref):
    x = x_ref[...]  # (W, NCH) float32

    # Zero-padding edge masks along W (sublane axis), hoisted once and reused
    # by all three convolutions.
    w_idx = lax.broadcasted_iota(jnp.int32, (W, NCH), 0)
    not_first = w_idx > 0        # rows valid after "use x[w-1]" shift
    not_last = w_idx < W - 1     # rows valid after "use x[w+1]" shift
    zeros = jnp.zeros((W, NCH), jnp.float32)

    def conv3x3(inp, w_ref, b_ref):
        # dw = -1 / +1 taps: sublane rolls on the XLU + edge masks (zero pad).
        s_m1 = jnp.where(not_first, pltpu.roll(inp, shift=1, axis=0), zeros)
        s_p1 = jnp.where(not_last, pltpu.roll(inp, shift=W - 1, axis=0), zeros)
        # Three accumulating K=128 bf16 dots (single-pass MXU, f32 accumulate).
        # Channel mixing and the dh (row) shift are baked into each 128x128
        # weight block; no (16,384) concat copy is materialized.
        acc = jnp.dot(s_m1.astype(jnp.bfloat16), w_ref[0:NCH, :],
                      preferred_element_type=jnp.float32)
        acc = acc + jnp.dot(inp.astype(jnp.bfloat16), w_ref[NCH:2 * NCH, :],
                            preferred_element_type=jnp.float32)
        acc = acc + jnp.dot(s_p1.astype(jnp.bfloat16), w_ref[2 * NCH:3 * NCH, :],
                            preferred_element_type=jnp.float32)
        return acc + b_ref[...]

    out = jnp.maximum(conv3x3(x, w1_ref, b1_ref), 0.0)     # cov1d_1 + relu_1
    out = jnp.maximum(conv3x3(out, w2_ref, b2_ref), 0.0)   # cov1d_2 + relu_2
    out = conv3x3(out, w3_ref, b3_ref)                      # cov1d_3

    # LayerNorm over n_step (= W, the sublane axis), biased variance, eps=1e-5
    mean = jnp.mean(out, axis=0, keepdims=True)
    var = jnp.mean(jnp.square(out - mean), axis=0, keepdims=True)
    out = (out - mean) * lax.rsqrt(var + EPS)
    out = out * g_ref[...] + bt_ref[...]     # gamma/beta pre-broadcast (W,NCH)

    out = jnp.maximum(out, 0.0)                              # relu_3
    o_ref[...] = (out + x).astype(o_ref.dtype)               # residual add


# ------------------------- one-time parameter packing -------------------------
def _make_conv_matrix(w):
    """w: (C_out, C_in, 3, 3) -> (3*N*C*H, N*C*H) bf16 fused right-multiply matrix.

    For kernel column j the (NCH, NCH) block is
        kron(I_N, sum_i kron(w[:, :, i, j].T, eye(H, k=1-i)))
    so channel mixing and the zero-padded dh (row) shift are baked into the
    weights; the three blocks are vstacked so the kernel can use three
    128-aligned K chunks (one per dw tap)."""
    eye_n = jnp.eye(N, dtype=jnp.float32)
    blocks = []
    for j in range(3):                       # kernel column (kw)
        a = jnp.zeros((C * H, C * H), jnp.float32)
        for i in range(3):                   # kernel row (kh)
            a = a + jnp.kron(w[:, :, i, j].T.astype(jnp.float32),
                             jnp.eye(H, k=1 - i, dtype=jnp.float32))
        blocks.append(jnp.kron(eye_n, a))    # (NCH, NCH), block-diag over batch
    return jnp.concatenate(blocks, axis=0).astype(jnp.bfloat16)  # (384, 128)


def _make_bias_row(b):
    """b: (C,) -> (1, NCH) f32 row matching the (n, c, h) lane ordering."""
    return jnp.tile(jnp.repeat(b.astype(jnp.float32), H), N).reshape(1, NCH)


def pack_conv_block_params(w1, b1, w2, b2, w3, b3, gamma, beta):
    """Call ONCE (outside the per-step jit).  Returns device-resident packed
    parameters so no kron expansion / HBM round trip happens per call."""
    g2d = jnp.broadcast_to(gamma.astype(jnp.float32).reshape(W, 1), (W, NCH))
    bt2d = jnp.broadcast_to(beta.astype(jnp.float32).reshape(W, 1), (W, NCH))
    return (_make_conv_matrix(w1), _make_bias_row(b1),
            _make_conv_matrix(w2), _make_bias_row(b2),
            _make_conv_matrix(w3), _make_bias_row(b3),
            g2d, bt2d)


# ------------------------- wrapper -------------------------
@jax.jit
def conv_block_pallas(x_nchw, wm1, b1r, wm2, b2r, wm3, b3r, g2d, bt2d):
    # Lane-dense layout: (W, N*C*H), lane index = n*C*H + c*H + h.
    x_b = jnp.transpose(x_nchw.astype(jnp.float32), (3, 0, 1, 2)).reshape(W, NCH)

    vmem = lambda: pl.BlockSpec(memory_space=pltpu.MemorySpace.VMEM)

    out_b = pl.pallas_call(
        conv_block_kernel,
        out_shape=jax.ShapeDtypeStruct((W, NCH), jnp.float32),
        in_specs=[vmem() for _ in range(9)],   # untiled, VMEM-resident, no grid
        out_specs=vmem(),
    )(x_b, wm1, b1r, wm2, b2r, wm3, b3r, g2d, bt2d)

    return jnp.transpose(out_b.reshape(W, N, C, H), (1, 2, 3, 0))


# ------------------------- pure-JAX reference -------------------------
def conv_block_ref(x, w1, b1, w2, b2, w3, b3, gamma, beta):
    def conv(inp, w, b):
        y = lax.conv_general_dilated(
            inp, w, window_strides=(1, 1), padding="SAME",
            dimension_numbers=("NCHW", "OIHW", "NCHW"),
            precision=lax.Precision.HIGHEST)
        return y + b[None, :, None, None]

    out = jax.nn.relu(conv(x, w1, b1))
    out = jax.nn.relu(conv(out, w2, b2))
    out = conv(out, w3, b3)
    mean = out.mean(axis=-1, keepdims=True)
    var = ((out - mean) ** 2).mean(axis=-1, keepdims=True)
    out = (out - mean) / jnp.sqrt(var + EPS) * gamma + beta
    out = jax.nn.relu(out)
    return out + x


# ------------------------- main -------------------------
if __name__ == "__main__":
    key = jax.random.PRNGKey(0)
    keys = jax.random.split(key, 10)

    x = jax.random.normal(keys[0], (N, C, H, W), jnp.float32)

    # Deterministic synthetic parameters (shapes from nn.Conv2d / nn.LayerNorm).
    w1 = 0.2 * jax.random.normal(keys[1], (C, C, 3, 3), jnp.float32)
    b1 = 0.1 * jax.random.normal(keys[2], (C,), jnp.float32)
    w2 = 0.2 * jax.random.normal(keys[3], (C, C, 3, 3), jnp.float32)
    b2 = 0.1 * jax.random.normal(keys[4], (C,), jnp.float32)
    w3 = 0.2 * jax.random.normal(keys[5], (C, C, 3, 3), jnp.float32)
    b3 = 0.1 * jax.random.normal(keys[6], (C,), jnp.float32)
    gamma = 1.0 + 0.1 * jax.random.normal(keys[7], (W,), jnp.float32)
    beta = 0.1 * jax.random.normal(keys[8], (W,), jnp.float32)

    # One-time packing (bf16 fused weights, bias rows, broadcast gamma/beta).
    packed = pack_conv_block_params(w1, b1, w2, b2, w3, b3, gamma, beta)
    packed = jax.tree_util.tree_map(jax.block_until_ready, packed)

    out = conv_block_pallas(x, *packed)
    out = jax.block_until_ready(out)

    ref = conv_block_ref(x, w1, b1, w2, b2, w3, b3, gamma, beta)
    assert out.shape == (N, C, H, W)
    # Tolerance accounts for the single-pass bf16 MXU path (per perf review);
    # accumulation depth is only ~36 terms and accumulation stays f32.
    assert jnp.allclose(out, ref, atol=3e-2, rtol=3e-2), (
        f"max abs err = {jnp.max(jnp.abs(out - ref))}")

    print("KERNEL_OK")
</pallas_src>

<mosaic_0001>
module attributes {stable_mosaic.version = 11 : i64} {
  func.func @conv_block_kernel(%arg0: memref<16x128xf32, #tpu.memory_space<vmem>>, %arg1: memref<384x128xbf16, #tpu.memory_space<vmem>>, %arg2: memref<1x128xf32, #tpu.memory_space<vmem>>, %arg3: memref<384x128xbf16, #tpu.memory_space<vmem>>, %arg4: memref<1x128xf32, #tpu.memory_space<vmem>>, %arg5: memref<384x128xbf16, #tpu.memory_space<vmem>>, %arg6: memref<1x128xf32, #tpu.memory_space<vmem>>, %arg7: memref<16x128xf32, #tpu.memory_space<vmem>>, %arg8: memref<16x128xf32, #tpu.memory_space<vmem>>, %arg9: memref<16x128xf32, #tpu.memory_space<vmem>>) attributes {dimension_semantics = [], scalar_prefetch = 0 : i64, scratch_operands = 0 : i64, tpu.core_type = #tpu.core_type<tc>} {
    %c0 = arith.constant 0 : index
    %c0_0 = arith.constant 0 : index
    %0 = vector.load %arg0[%c0, %c0_0] : memref<16x128xf32, #tpu.memory_space<vmem>>, vector<16x128xf32>
    %1 = tpu.iota {dimensions = array<i32: 0>} : vector<16x128xi32>
    %c0_i32 = arith.constant 0 : i32
    %2 = vector.broadcast %c0_i32 : i32 to vector<16x128xi32>
    %3 = arith.cmpi sgt, %1, %2 : vector<16x128xi32>
    %c15_i32 = arith.constant 15 : i32
    %4 = vector.broadcast %c15_i32 : i32 to vector<16x128xi32>
    %5 = arith.cmpi slt, %1, %4 : vector<16x128xi32>
    %cst = arith.constant 0.000000e+00 : f32
    %6 = vector.broadcast %cst : f32 to vector<16x128xf32>
    %c1_i32 = arith.constant 1 : i32
    %7 = tpu.dynamic_rotate %0 by %c1_i32 dim 0 : vector<16x128xf32>, i32 -> vector<16x128xf32>
    %8 = arith.select %3, %7, %6 : vector<16x128xi1>, vector<16x128xf32>
    %c15_i32_1 = arith.constant 15 : i32
    %9 = tpu.dynamic_rotate %0 by %c15_i32_1 dim 0 : vector<16x128xf32>, i32 -> vector<16x128xf32>
    %10 = arith.select %5, %9, %6 : vector<16x128xi1>, vector<16x128xf32>
    %11 = arith.truncf %8 : vector<16x128xf32> to vector<16x128xbf16>
    %c0_2 = arith.constant 0 : index
    %c0_3 = arith.constant 0 : index
    %12 = vector.load %arg1[%c0_2, %c0_3] : memref<384x128xbf16, #tpu.memory_space<vmem>>, vector<128x128xbf16>
    %cst_4 = arith.constant dense<0.000000e+00> : vector<16x128xf32>
    %13 = tpu.matmul %11, %12, %cst_4 {dimension_numbers = #tpu.dot_dimension_numbers<[1], [0], [0], [1], [0, 0, 1, 1], [], []>} : vector<16x128xbf16>, vector<128x128xbf16>, vector<16x128xf32> -> vector<16x128xf32>
    %14 = arith.truncf %0 : vector<16x128xf32> to vector<16x128xbf16>
    %c128 = arith.constant 128 : index
    %c0_5 = arith.constant 0 : index
    %15 = vector.load %arg1[%c128, %c0_5] : memref<384x128xbf16, #tpu.memory_space<vmem>>, vector<128x128xbf16>
    %cst_6 = arith.constant dense<0.000000e+00> : vector<16x128xf32>
    %16 = tpu.matmul %14, %15, %cst_6 {dimension_numbers = #tpu.dot_dimension_numbers<[1], [0], [0], [1], [0, 0, 1, 1], [], []>} : vector<16x128xbf16>, vector<128x128xbf16>, vector<16x128xf32> -> vector<16x128xf32>
    %17 = arith.addf %13, %16 : vector<16x128xf32>
    %18 = arith.truncf %10 : vector<16x128xf32> to vector<16x128xbf16>
    %c256 = arith.constant 256 : index
    %c0_7 = arith.constant 0 : index
    %19 = vector.load %arg1[%c256, %c0_7] : memref<384x128xbf16, #tpu.memory_space<vmem>>, vector<128x128xbf16>
    %cst_8 = arith.constant dense<0.000000e+00> : vector<16x128xf32>
    %20 = tpu.matmul %18, %19, %cst_8 {dimension_numbers = #tpu.dot_dimension_numbers<[1], [0], [0], [1], [0, 0, 1, 1], [], []>} : vector<16x128xbf16>, vector<128x128xbf16>, vector<16x128xf32> -> vector<16x128xf32>
    %21 = arith.addf %17, %20 : vector<16x128xf32>
    %c0_9 = arith.constant 0 : index
    %c0_10 = arith.constant 0 : index
    %22 = vector.load %arg2[%c0_9, %c0_10] : memref<1x128xf32, #tpu.memory_space<vmem>>, vector<1x128xf32>
    %23 = vector.broadcast %22 : vector<1x128xf32> to vector<16x128xf32>
    %24 = arith.addf %21, %23 : vector<16x128xf32>
    %cst_11 = arith.constant 0.000000e+00 : f32
    %25 = vector.broadcast %cst_11 : f32 to vector<16x128xf32>
    %26 = arith.maximumf %24, %25 : vector<16x128xf32>
    %c1_i32_12 = arith.constant 1 : i32
    %27 = tpu.dynamic_rotate %26 by %c1_i32_12 dim 0 : vector<16x128xf32>, i32 -> vector<16x128xf32>
    %28 = arith.select %3, %27, %6 : vector<16x128xi1>, vector<16x128xf32>
    %c15_i32_13 = arith.constant 15 : i32
    %29 = tpu.dynamic_rotate %26 by %c15_i32_13 dim 0 : vector<16x128xf32>, i32 -> vector<16x128xf32>
    %30 = arith.select %5, %29, %6 : vector<16x128xi1>, vector<16x128xf32>
    %31 = arith.truncf %28 : vector<16x128xf32> to vector<16x128xbf16>
    %c0_14 = arith.constant 0 : index
    %c0_15 = arith.constant 0 : index
    %32 = vector.load %arg3[%c0_14, %c0_15] : memref<384x128xbf16, #tpu.memory_space<vmem>>, vector<128x128xbf16>
    %cst_16 = arith.constant dense<0.000000e+00> : vector<16x128xf32>
    %33 = tpu.matmul %31, %32, %cst_16 {dimension_numbers = #tpu.dot_dimension_numbers<[1], [0], [0], [1], [0, 0, 1, 1], [], []>} : vector<16x128xbf16>, vector<128x128xbf16>, vector<16x128xf32> -> vector<16x128xf32>
    %34 = arith.truncf %26 : vector<16x128xf32> to vector<16x128xbf16>
    %c128_17 = arith.constant 128 : index
    %c0_18 = arith.constant 0 : index
    %35 = vector.load %arg3[%c128_17, %c0_18] : memref<384x128xbf16, #tpu.memory_space<vmem>>, vector<128x128xbf16>
    %cst_19 = arith.constant dense<0.000000e+00> : vector<16x128xf32>
    %36 = tpu.matmul %34, %35, %cst_19 {dimension_numbers = #tpu.dot_dimension_numbers<[1], [0], [0], [1], [0, 0, 1, 1], [], []>} : vector<16x128xbf16>, vector<128x128xbf16>, vector<16x128xf32> -> vector<16x128xf32>
    %37 = arith.addf %33, %36 : vector<16x128xf32>
    %38 = arith.truncf %30 : vector<16x128xf32> to vector<16x128xbf16>
    %c256_20 = arith.constant 256 : index
    %c0_21 = arith.constant 0 : index
    %39 = vector.load %arg3[%c256_20, %c0_21] : memref<384x128xbf16, #tpu.memory_space<vmem>>, vector<128x128xbf16>
    %cst_22 = arith.constant dense<0.000000e+00> : vector<16x128xf32>
    %40 = tpu.matmul %38, %39, %cst_22 {dimension_numbers = #tpu.dot_dimension_numbers<[1], [0], [0], [1], [0, 0, 1, 1], [], []>} : vector<16x128xbf16>, vector<128x128xbf16>, vector<16x128xf32> -> vector<16x128xf32>
    %41 = arith.addf %37, %40 : vector<16x128xf32>
    %c0_23 = arith.constant 0 : index
    %c0_24 = arith.constant 0 : index
    %42 = vector.load %arg4[%c0_23, %c0_24] : memref<1x128xf32, #tpu.memory_space<vmem>>, vector<1x128xf32>
    %43 = vector.broadcast %42 : vector<1x128xf32> to vector<16x128xf32>
    %44 = arith.addf %41, %43 : vector<16x128xf32>
    %cst_25 = arith.constant 0.000000e+00 : f32
    %45 = vector.broadcast %cst_25 : f32 to vector<16x128xf32>
    %46 = arith.maximumf %44, %45 : vector<16x128xf32>
    %c1_i32_26 = arith.constant 1 : i32
    %47 = tpu.dynamic_rotate %46 by %c1_i32_26 dim 0 : vector<16x128xf32>, i32 -> vector<16x128xf32>
    %48 = arith.select %3, %47, %6 : vector<16x128xi1>, vector<16x128xf32>
    %c15_i32_27 = arith.constant 15 : i32
    %49 = tpu.dynamic_rotate %46 by %c15_i32_27 dim 0 : vector<16x128xf32>, i32 -> vector<16x128xf32>
    %50 = arith.select %5, %49, %6 : vector<16x128xi1>, vector<16x128xf32>
    %51 = arith.truncf %48 : vector<16x128xf32> to vector<16x128xbf16>
    %c0_28 = arith.constant 0 : index
    %c0_29 = arith.constant 0 : index
    %52 = vector.load %arg5[%c0_28, %c0_29] : memref<384x128xbf16, #tpu.memory_space<vmem>>, vector<128x128xbf16>
    %cst_30 = arith.constant dense<0.000000e+00> : vector<16x128xf32>
    %53 = tpu.matmul %51, %52, %cst_30 {dimension_numbers = #tpu.dot_dimension_numbers<[1], [0], [0], [1], [0, 0, 1, 1], [], []>} : vector<16x128xbf16>, vector<128x128xbf16>, vector<16x128xf32> -> vector<16x128xf32>
    %54 = arith.truncf %46 : vector<16x128xf32> to vector<16x128xbf16>
    %c128_31 = arith.constant 128 : index
    %c0_32 = arith.constant 0 : index
    %55 = vector.load %arg5[%c128_31, %c0_32] : memref<384x128xbf16, #tpu.memory_space<vmem>>, vector<128x128xbf16>
    %cst_33 = arith.constant dense<0.000000e+00> : vector<16x128xf32>
    %56 = tpu.matmul %54, %55, %cst_33 {dimension_numbers = #tpu.dot_dimension_numbers<[1], [0], [0], [1], [0, 0, 1, 1], [], []>} : vector<16x128xbf16>, vector<128x128xbf16>, vector<16x128xf32> -> vector<16x128xf32>
    %57 = arith.addf %53, %56 : vector<16x128xf32>
    %58 = arith.truncf %50 : vector<16x128xf32> to vector<16x128xbf16>
    %c256_34 = arith.constant 256 : index
    %c0_35 = arith.constant 0 : index
    %59 = vector.load %arg5[%c256_34, %c0_35] : memref<384x128xbf16, #tpu.memory_space<vmem>>, vector<128x128xbf16>
    %cst_36 = arith.constant dense<0.000000e+00> : vector<16x128xf32>
    %60 = tpu.matmul %58, %59, %cst_36 {dimension_numbers = #tpu.dot_dimension_numbers<[1], [0], [0], [1], [0, 0, 1, 1], [], []>} : vector<16x128xbf16>, vector<128x128xbf16>, vector<16x128xf32> -> vector<16x128xf32>
    %61 = arith.addf %57, %60 : vector<16x128xf32>
    %c0_37 = arith.constant 0 : index
    %c0_38 = arith.constant 0 : index
    %62 = vector.load %arg6[%c0_37, %c0_38] : memref<1x128xf32, #tpu.memory_space<vmem>>, vector<1x128xf32>
    %63 = vector.broadcast %62 : vector<1x128xf32> to vector<16x128xf32>
    %64 = arith.addf %61, %63 : vector<16x128xf32>
    %cst_39 = arith.constant dense<0.000000e+00> : vector<128xf32>
    %65 = vector.multi_reduction <add>, %64, %cst_39 [0] : vector<16x128xf32> to vector<128xf32>
    %66 = vector.shape_cast %65 : vector<128xf32> to vector<1x128xf32>
    %cst_40 = arith.constant 1.600000e+01 : f32
    %67 = vector.broadcast %cst_40 : f32 to vector<1x128xf32>
    %68 = arith.divf %66, %67 : vector<1x128xf32>
    %69 = vector.broadcast %68 : vector<1x128xf32> to vector<16x128xf32>
    %70 = arith.subf %64, %69 : vector<16x128xf32>
    %71 = arith.mulf %70, %70 : vector<16x128xf32>
    %cst_41 = arith.constant dense<0.000000e+00> : vector<128xf32>
    %72 = vector.multi_reduction <add>, %71, %cst_41 [0] : vector<16x128xf32> to vector<128xf32>
    %73 = vector.shape_cast %72 : vector<128xf32> to vector<1x128xf32>
    %cst_42 = arith.constant 1.600000e+01 : f32
    %74 = vector.broadcast %cst_42 : f32 to vector<1x128xf32>
    %75 = arith.divf %73, %74 : vector<1x128xf32>
    %76 = vector.broadcast %68 : vector<1x128xf32> to vector<16x128xf32>
    %77 = arith.subf %64, %76 : vector<16x128xf32>
    %cst_43 = arith.constant 9.99999974E-6 : f32
    %78 = vector.broadcast %cst_43 : f32 to vector<1x128xf32>
    %79 = arith.addf %75, %78 : vector<1x128xf32>
    %80 = math.rsqrt %79 : vector<1x128xf32>
    %81 = vector.broadcast %80 : vector<1x128xf32> to vector<16x128xf32>
    %82 = arith.mulf %77, %81 : vector<16x128xf32>
    %c0_44 = arith.constant 0 : index
    %c0_45 = arith.constant 0 : index
    %83 = vector.load %arg7[%c0_44, %c0_45] : memref<16x128xf32, #tpu.memory_space<vmem>>, vector<16x128xf32>
    %84 = arith.mulf %82, %83 : vector<16x128xf32>
    %c0_46 = arith.constant 0 : index
    %c0_47 = arith.constant 0 : index
    %85 = vector.load %arg8[%c0_46, %c0_47] : memref<16x128xf32, #tpu.memory_space<vmem>>, vector<16x128xf32>
    %86 = arith.addf %84, %85 : vector<16x128xf32>
    %cst_48 = arith.constant 0.000000e+00 : f32
    %87 = vector.broadcast %cst_48 : f32 to vector<16x128xf32>
    %88 = arith.maximumf %86, %87 : vector<16x128xf32>
    %89 = arith.addf %88, %0 : vector<16x128xf32>
    %c0_49 = arith.constant 0 : index
    %c0_50 = arith.constant 0 : index
    %90 = vector.load %arg9[%c0_49, %c0_50] : memref<16x128xf32, #tpu.memory_space<vmem>>, vector<16x128xf32>
    tpu.vector_store %arg9[%c0_49, %c0_50], %89 {strides = array<i32>} : memref<16x128xf32, #tpu.memory_space<vmem>>, vector<16x128xf32>,
    return
  }
}

</mosaic_0001>

<llo_original>
// kernel: conv_block_pallas.1
$region0: #{conv_block_pallas.1}
  #allocation0 [shape = 'u32[]', space=smem, size = 0x4, offset = 0x4, fixed_abs, tag = 'smem constant byte address 0x4 - core index']
  #allocation1 [shape = 'u32[144,128]{1,0:T(1,128)}', space=vmem, size = 0x12000, scoped, tag = 'internal scratch']
  %s0 = inlined_call_operand.vmem [shape: f32[16,128], index: 0, kind: input, shape index: {}]
  %s1 = inlined_call_operand.hbm [shape: bf16[384,128], index: 1, kind: input, shape index: {}]
  %s2 = inlined_call_operand.vmem [shape: f32[1,128], index: 2, kind: input, shape index: {}]
  %s3 = inlined_call_operand.hbm [shape: bf16[384,128], index: 3, kind: input, shape index: {}]
  %s4 = inlined_call_operand.vmem [shape: f32[1,128], index: 4, kind: input, shape index: {}]
  %s5 = inlined_call_operand.hbm [shape: bf16[384,128], index: 5, kind: input, shape index: {}]
  %s6 = inlined_call_operand.vmem [shape: f32[1,128], index: 6, kind: input, shape index: {}]
  %s7 = inlined_call_operand.vmem [shape: f32[16,128], index: 7, kind: input, shape index: {}]
  %s8 = inlined_call_operand.vmem [shape: f32[16,128], index: 8, kind: input, shape index: {}]
  %s9 = inlined_call_operand.vmem [shape: f32[16,128], index: 9, kind: output, shape index: {}]
  %s10 = sld [smem:[#allocation0]]
  $region58: #{conv_block_pallas.1} parent=0
    _
  %s12 = ssub.s32 1, %s10
  %s13 = scalar_select 0, %s12, %s10
  $region1: #{conv_block_pallas.1} parent=0
    #allocation2 [shape = 'u8[98304]{0}', space=vmem, size = 0x18000, scoped, tag = 'input window, operand 1, single buffered']
    #allocation3 [shape = 's32[1]{0}', space=sflag, size = 0x4, scoped, tag = 'scoped memory for conv_block_pallas.1']
    #allocation4 [shape = 'u8[98304]{0}', space=vmem, size = 0x18000, scoped, tag = 'input window, operand 3, single buffered']
    #allocation5 [shape = 's32[1]{0}', space=sflag, size = 0x4, scoped, tag = 'scoped memory for conv_block_pallas.1']
    #allocation6 [shape = 'u8[98304]{0}', space=vmem, size = 0x18000, scoped, tag = 'input window, operand 5, single buffered']
    %14 = vsyncpa [#allocation3], 0
    %15 = vsyncpa [#allocation5], 0
    // Predicated region
    $region2: #{conv_block_pallas.1} parent=1 // pred_check
      _
    $region3: #{conv_block_pallas.1} parent=1 // pred_check_branch
      %17 = sbr.rel (0) target = $region5
    $region4: #{conv_block_pallas.1} parent=1 // pred_region
      _
    $region5: #{conv_block_pallas.1} parent=1 // pred_fallthru
      _
    // Predicated region
    $region6: #{conv_block_pallas.1} parent=1 // pred_check
      _
    $region7: #{conv_block_pallas.1} parent=1 // pred_check_branch
      %19 = sbr.rel (0) target = $region9
    $region8: #{conv_block_pallas.1} parent=1 // pred_region
      %s21 = ssub.s32 3072, 3072
      %22 = vsyncadd [#allocation3], %s21
      %s23 = sshll.u32 [#allocation2], 4
      %s24 = int_to_ptr.vmem [resolvable:$true] %s23
      %29 = dma.hbm_to_vmem [thread:$0]  %s1, 3072, %s24, [#allocation3], 64, 64, 4
    $region9: #{conv_block_pallas.1} parent=1 // pred_fallthru
      _
    // Predicated region
    $region10: #{conv_block_pallas.1} parent=1 // pred_check
      _
    $region11: #{conv_block_pallas.1} parent=1 // pred_check_branch
      %31 = sbr.rel (0) target = $region13
    $region12: #{conv_block_pallas.1} parent=1 // pred_region
      _
    $region13: #{conv_block_pallas.1} parent=1 // pred_fallthru
      _
    // Predicated region
    $region14: #{conv_block_pallas.1} parent=1 // pred_check
      _
    $region15: #{conv_block_pallas.1} parent=1 // pred_check_branch
      %33 = sbr.rel (0) target = $region17
    $region16: #{conv_block_pallas.1} parent=1 // pred_region
      %s35 = ssub.s32 3072, 3072
      %36 = vsyncadd [#allocation5], %s35
      %s37 = sshll.u32 [#allocation4], 4
      %s38 = int_to_ptr.vmem [resolvable:$true] %s37
      %43 = dma.hbm_to_vmem [thread:$0]  %s3, 3072, %s38, [#allocation5], 64, 64, 4
    $region17: #{conv_block_pallas.1} parent=1 // pred_fallthru
      _
    // Predicated region
    $region18: #{conv_block_pallas.1} parent=1 // pred_check
      _
    $region19: #{conv_block_pallas.1} parent=1 // pred_check_branch
      %45 = sbr.rel (0) target = $region21
    $region20: #{conv_block_pallas.1} parent=1 // pred_region
      _
    $region21: #{conv_block_pallas.1} parent=1 // pred_fallthru
      _
    // Predicated region
    $region22: #{conv_block_pallas.1} parent=1 // pred_check
      _
    $region23: #{conv_block_pallas.1} parent=1 // pred_check_branch
      %47 = sbr.rel (0) target = $region25
    $region24: #{conv_block_pallas.1} parent=1 // pred_region
      %s49 = ssub.s32 3072, 3072
      %50 = vsyncadd [#allocation5], %s49
      %s51 = sshll.u32 [#allocation6], 4
      %s52 = int_to_ptr.vmem [resolvable:$true] %s51
      %57 = dma.hbm_to_vmem [thread:$0]  %s5, 3072, %s52, [#allocation5], 64, 64, 4
    $region25: #{conv_block_pallas.1} parent=1 // pred_fallthru
      _
    // Predicated region
    $region26: #{conv_block_pallas.1} parent=1 // pred_check
      _
    $region27: #{conv_block_pallas.1} parent=1 // pred_check_branch
      %59 = sbr.rel (0) target = $region29
    $region28: #{conv_block_pallas.1} parent=1 // pred_region
      _
    $region29: #{conv_block_pallas.1} parent=1 // pred_fallthru
      _
    // Predicated region
    $region30: #{conv_block_pallas.1} parent=1 // pred_check
      _
    $region31: #{conv_block_pallas.1} parent=1 // pred_check_branch
      %61 = sbr.rel (0) target = $region33
    $region32: #{conv_block_pallas.1} parent=1 // pred_region
      _
    $region33: #{conv_block_pallas.1} parent=1 // pred_fallthru
      _
    // Predicated region
    $region34: #{conv_block_pallas.1} parent=1 // pred_check
      _
    $region35: #{conv_block_pallas.1} parent=1 // pred_check_branch
      %63 = sbr.rel (0) target = $region37
    $region36: #{conv_block_pallas.1} parent=1 // pred_region
      _
    $region37: #{conv_block_pallas.1} parent=1 // pred_fallthru
      _
    // Predicated region
    $region38: #{conv_block_pallas.1} parent=1 // pred_check
      _
    $region39: #{conv_block_pallas.1} parent=1 // pred_check_branch
      %65 = sbr.rel (0) target = $region41
    $region40: #{conv_block_pallas.1} parent=1 // pred_region
      %66 = dma.done [#allocation3], 3072
    $region41: #{conv_block_pallas.1} parent=1 // pred_fallthru
      _
    // Predicated region
    $region42: #{conv_block_pallas.1} parent=1 // pred_check
      _
    $region43: #{conv_block_pallas.1} parent=1 // pred_check_branch
      %68 = sbr.rel (0) target = $region45
    $region44: #{conv_block_pallas.1} parent=1 // pred_region
      %69 = dma.done [#allocation5], 3072
    $region45: #{conv_block_pallas.1} parent=1 // pred_fallthru
      _
    // Predicated region
    $region46: #{conv_block_pallas.1} parent=1 // pred_check
      _
    $region47: #{conv_block_pallas.1} parent=1 // pred_check_branch
      %71 = sbr.rel (0) target = $region49
    $region48: #{conv_block_pallas.1} parent=1 // pred_region
      %72 = dma.done [#allocation5], 3072
    $region49: #{conv_block_pallas.1} parent=1 // pred_fallthru
      _
    %v74 = vld [vmem:[%s0] sm:$0xff]
    %v75 = vld [vmem:[%s0 + $0x8] sm:$0xff]
    %v76 = vlaneseq
    %v77 = vshrl.u32 %v76, 7
    %v78 = vadd.s32 %v77, 8
    %vm79 = vcmp.gt.s32.totalorder %v77, 0
    %vm80 = vcmp.gt.s32.totalorder %v78, 0
    %vm81 = vcmp.lt.s32.totalorder %v77, 15
    %vm82 = vcmp.lt.s32.totalorder %v78, 15
    %v83 = vrot.slane %v74, 7
    %v84 = vrot.slane %v75, 7
    %vm85 = vcmp.lt.s32.totalorder %v77, 1
    %v86 = vsel %vm85, %v83, %v84
    %v87 = vsel %vm85, %v84, %v83
    %v88 = vsel %vm79, %v87, 0.0
    %v89 = vsel %vm80, %v86, 0.0
    %v90 = vrot.slane %v74, 1
    %v91 = vrot.slane %v75, 1
    %vm92 = vcmp.lt.s32.totalorder %v77, 7
    %v93 = vsel %vm92, %v90, %v91
    %v94 = vsel %vm92, %v91, %v90
    %v95 = vsel %vm81, %v93, 0.0
    %v96 = vsel %vm82, %v94, 0.0
    %v97 = vpack.c.bf16 %v89, %v88
    %v98 = vld [vmem:[#allocation2] sm:$0xf]
    %v99 = vld [vmem:[#allocation2 + $0x4] sm:$0xf]
    %v100 = vld [vmem:[#allocation2 + $0x8] sm:$0xf]
    %v101 = vld [vmem:[#allocation2 + $0xc] sm:$0xf]
    %v102 = vld [vmem:[#allocation2 + $0x10] sm:$0xf]
    %v103 = vld [vmem:[#allocation2 + $0x14] sm:$0xf]
    %v104 = vld [vmem:[#allocation2 + $0x18] sm:$0xf]
    %v105 = vld [vmem:[#allocation2 + $0x1c] sm:$0xf]
    %v106 = vld [vmem:[#allocation2 + $0x20] sm:$0xf]
    %v107 = vld [vmem:[#allocation2 + $0x24] sm:$0xf]
    %v108 = vld [vmem:[#allocation2 + $0x28] sm:$0xf]
    %v109 = vld [vmem:[#allocation2 + $0x2c] sm:$0xf]
    %v110 = vld [vmem:[#allocation2 + $0x30] sm:$0xf]
    %v111 = vld [vmem:[#allocation2 + $0x34] sm:$0xf]
    %v112 = vld [vmem:[#allocation2 + $0x38] sm:$0xf]
    %v113 = vld [vmem:[#allocation2 + $0x3c] sm:$0xf]
    %v114 = vpack.c.bf16 %v75, %v74
    %v115 = vld [vmem:[#allocation2 + $0x40] sm:$0xf]
    %v116 = vld [vmem:[#allocation2 + $0x44] sm:$0xf]
    %v117 = vld [vmem:[#allocation2 + $0x48] sm:$0xf]
    %v118 = vld [vmem:[#allocation2 + $0x4c] sm:$0xf]
    %v119 = vld [vmem:[#allocation2 + $0x50] sm:$0xf]
    %v120 = vld [vmem:[#allocation2 + $0x54] sm:$0xf]
    %v121 = vld [vmem:[#allocation2 + $0x58] sm:$0xf]
    %v122 = vld [vmem:[#allocation2 + $0x5c] sm:$0xf]
    %v123 = vld [vmem:[#allocation2 + $0x60] sm:$0xf]
    %v124 = vld [vmem:[#allocation2 + $0x64] sm:$0xf]
    %v125 = vld [vmem:[#allocation2 + $0x68] sm:$0xf]
    %v126 = vld [vmem:[#allocation2 + $0x6c] sm:$0xf]
    %v127 = vld [vmem:[#allocation2 + $0x70] sm:$0xf]
    %v128 = vld [vmem:[#allocation2 + $0x74] sm:$0xf]
    %v129 = vld [vmem:[#allocation2 + $0x78] sm:$0xf]
    %v130 = vld [vmem:[#allocation2 + $0x7c] sm:$0xf]
    %v147 = vunpack.c.l.b16 %v115
    %v148 = vunpack.c.l.b16 %v116
    %v149 = vunpack.c.l.b16 %v117
    %v150 = vunpack.c.l.b16 %v118
    %v151 = vunpack.c.l.b16 %v119
    %v152 = vunpack.c.l.b16 %v120
    %v153 = vunpack.c.l.b16 %v121
    %v154 = vunpack.c.l.b16 %v122
    %v155 = vunpack.c.l.b16 %v123
    %v156 = vunpack.c.l.b16 %v124
    %v157 = vunpack.c.l.b16 %v125
    %v158 = vunpack.c.l.b16 %v126
    %v159 = vunpack.c.l.b16 %v127
    %v160 = vunpack.c.l.b16 %v128
    %v161 = vunpack.c.l.b16 %v129
    %v162 = vunpack.c.l.b16 %v130
    %v163 = vpack.c.b16 %v148, %v147
    %v164 = vpack.c.b16 %v150, %v149
    %v165 = vpack.c.b16 %v152, %v151
    %v166 = vpack.c.b16 %v154, %v153
    %v167 = vpack.c.b16 %v156, %v155
    %v168 = vpack.c.b16 %v158, %v157
    %v169 = vpack.c.b16 %v160, %v159
    %v170 = vpack.c.b16 %v162, %v161
    %179 = vmatprep.subr.bf16.mxu0 0
    %180 = vmatpush1.bf16.msra.mxu0 %v163
    %181 = vmatprep.subr.bf16.mxu0 0
    %182 = vmatpush1.bf16.msra.mxu0 %v164
    %183 = vmatprep.subr.bf16.mxu0 0
    %184 = vmatpush1.bf16.msra.mxu0 %v165
    %185 = vmatprep.subr.bf16.mxu0 0
    %186 = vmatpush1.bf16.msra.mxu0 %v166
    %187 = vmatprep.subr.bf16.mxu0 0
    %188 = vmatpush1.bf16.msra.mxu0 %v167
    %189 = vmatprep.subr.bf16.mxu0 0
    %190 = vmatpush1.bf16.msra.mxu0 %v168
    %191 = vmatprep.subr.bf16.mxu0 0
    %192 = vmatpush1.bf16.msra.mxu0 %v169
    %193 = vmatprep.subr.bf16.mxu0 0
    %194 = vmatpush1.bf16.msra.mxu0 %v170
    %195 = vmatprep.subr.bf16.mxu0 0
    %196 = vmatpush1.bf16.msra.mxu0 0
    %197 = vmatprep.subr.bf16.mxu0 0
    %198 = vmatpush1.bf16.msra.mxu0 0
    %199 = vmatprep.subr.bf16.mxu0 0
    %200 = vmatpush1.bf16.msra.mxu0 0
    %201 = vmatprep.subr.bf16.mxu0 0
    %202 = vmatpush1.bf16.msra.mxu0 0
    %203 = vmatprep.subr.bf16.mxu0 0
    %204 = vmatpush1.bf16.msra.mxu0 0
    %205 = vmatprep.subr.bf16.mxu0 0
    %206 = vmatpush1.bf16.msra.mxu0 0
    %207 = vmatprep.subr.bf16.mxu0 0
    %208 = vmatpush1.bf16.msra.mxu0 0
    %209 = vmatprep.subr.bf16.mxu0 0
    %210 = vmatpush1.bf16.msra.mxu0 0
    %211 = vmatprep.mubr.bf16.mxu0 0
    %212 = vmatmul.mubr.bf16.gmra.mrb[0].mxu0 %v114
    %v213 = vpop.f32.mrb[0].mxu0
    %v214 = vadd.f32 0.0, %v213
    %v215 = vpop.f32.mrb[0].mxu0
    %v216 = vpop.f32.mrb[0].mxu0
    %v217 = vadd.f32 0.0, %v216
    %v218 = vpop.f32.mrb[0].mxu0
    %219 = vdwg.mxu0
    %v236 = vunpack.c.l.b16 %v98
    %v237 = vunpack.c.l.b16 %v99
    %v238 = vunpack.c.l.b16 %v100
    %v239 = vunpack.c.l.b16 %v101
    %v240 = vunpack.c.l.b16 %v102
    %v241 = vunpack.c.l.b16 %v103
    %v242 = vunpack.c.l.b16 %v104
    %v243 = vunpack.c.l.b16 %v105
    %v244 = vunpack.c.l.b16 %v106
    %v245 = vunpack.c.l.b16 %v107
    %v246 = vunpack.c.l.b16 %v108
    %v247 = vunpack.c.l.b16 %v109
    %v248 = vunpack.c.l.b16 %v110
    %v249 = vunpack.c.l.b16 %v111
    %v250 = vunpack.c.l.b16 %v112
    %v251 = vunpack.c.l.b16 %v113
    %v252 = vpack.c.b16 %v237, %v236
    %v253 = vpack.c.b16 %v239, %v238
    %v254 = vpack.c.b16 %v241, %v240
    %v255 = vpack.c.b16 %v243, %v242
    %v256 = vpack.c.b16 %v245, %v244
    %v257 = vpack.c.b16 %v247, %v246
    %v258 = vpack.c.b16 %v249, %v248
    %v259 = vpack.c.b16 %v251, %v250
    %268 = vmatprep.subr.bf16.mxu0 0
    %269 = vmatpush1.bf16.msra.mxu0 %v252
    %270 = vmatprep.subr.bf16.mxu0 0
    %271 = vmatpush1.bf16.msra.mxu0 %v253
    %272 = vmatprep.subr.bf16.mxu0 0
    %273 = vmatpush1.bf16.msra.mxu0 %v254
    %274 = vmatprep.subr.bf16.mxu0 0
    %275 = vmatpush1.bf16.msra.mxu0 %v255
    %276 = vmatprep.subr.bf16.mxu0 0
    %277 = vmatpush1.bf16.msra.mxu0 %v256
    %278 = vmatprep.subr.bf16.mxu0 0
    %279 = vmatpush1.bf16.msra.mxu0 %v257
    %280 = vmatprep.subr.bf16.mxu0 0
    %281 = vmatpush1.bf16.msra.mxu0 %v258
    %282 = vmatprep.subr.bf16.mxu0 0
    %283 = vmatpush1.bf16.msra.mxu0 %v259
    %284 = vmatprep.subr.bf16.mxu0 0
    %285 = vmatpush1.bf16.msra.mxu0 0
    %286 = vmatprep.subr.bf16.mxu0 0
    %287 = vmatpush1.bf16.msra.mxu0 0
    %288 = vmatprep.subr.bf16.mxu0 0
    %289 = vmatpush1.bf16.msra.mxu0 0
    %290 = vmatprep.subr.bf16.mxu0 0
    %291 = vmatpush1.bf16.msra.mxu0 0
    %292 = vmatprep.subr.bf16.mxu0 0
    %293 = vmatpush1.bf16.msra.mxu0 0
    %294 = vmatprep.subr.bf16.mxu0 0
    %295 = vmatpush1.bf16.msra.mxu0 0
    %296 = vmatprep.subr.bf16.mxu0 0
    %297 = vmatpush1.bf16.msra.mxu0 0
    %298 = vmatprep.subr.bf16.mxu0 0
    %299 = vmatpush1.bf16.msra.mxu0 0
    %300 = vmatprep.mubr.bf16.mxu0 0
    %301 = vmatmul.mubr.bf16.gmra.mrb[0].mxu0 %v97
    %v302 = vpop.f32.mrb[0].mxu0
    %v303 = vadd.f32 %v214, %v302
    %v304 = vpop.f32.mrb[0].mxu0
    %v305 = vpop.f32.mrb[0].mxu0
    %v306 = vadd.f32 %v217, %v305
    %v307 = vpop.f32.mrb[0].mxu0
    %308 = vdwg.mxu0
    %v309 = vpack.c.bf16 %v96, %v95
    %v310 = vld [vmem:[#allocation2 + $0x80] sm:$0xf]
    %v311 = vld [vmem:[#allocation2 + $0x84] sm:$0xf]
    %v312 = vld [vmem:[#allocation2 + $0x88] sm:$0xf]
    %v313 = vld [vmem:[#allocation2 + $0x8c] sm:$0xf]
    %v314 = vld [vmem:[#allocation2 + $0x90] sm:$0xf]
    %v315 = vld [vmem:[#allocation2 + $0x94] sm:$0xf]
    %v316 = vld [vmem:[#allocation2 + $0x98] sm:$0xf]
    %v317 = vld [vmem:[#allocation2 + $0x9c] sm:$0xf]
    %v318 = vld [vmem:[#allocation2 + $0xa0] sm:$0xf]
    %v319 = vld [vmem:[#allocation2 + $0xa4] sm:$0xf]
    %v320 = vld [vmem:[#allocation2 + $0xa8] sm:$0xf]
    %v321 = vld [vmem:[#allocation2 + $0xac] sm:$0xf]
    %v322 = vld [vmem:[#allocation2 + $0xb0] sm:$0xf]
    %v323 = vld [vmem:[#allocation2 + $0xb4] sm:$0xf]
    %v324 = vld [vmem:[#allocation2 + $0xb8] sm:$0xf]
    %v325 = vld [vmem:[#allocation2 + $0xbc] sm:$0xf]
    %v342 = vunpack.c.l.b16 %v310
    %v343 = vunpack.c.l.b16 %v311
    %v344 = vunpack.c.l.b16 %v312
    %v345 = vunpack.c.l.b16 %v313
    %v346 = vunpack.c.l.b16 %v314
    %v347 = vunpack.c.l.b16 %v315
    %v348 = vunpack.c.l.b16 %v316
    %v349 = vunpack.c.l.b16 %v317
    %v350 = vunpack.c.l.b16 %v318
    %v351 = vunpack.c.l.b16 %v319
    %v352 = vunpack.c.l.b16 %v320
    %v353 = vunpack.c.l.b16 %v321
    %v354 = vunpack.c.l.b16 %v322
    %v355 = vunpack.c.l.b16 %v323
    %v356 = vunpack.c.l.b16 %v324
    %v357 = vunpack.c.l.b16 %v325
    %v358 = vpack.c.b16 %v343, %v342
    %v359 = vpack.c.b16 %v345, %v344
    %v360 = vpack.c.b16 %v347, %v346
    %v361 = vpack.c.b16 %v349, %v348
    %v362 = vpack.c.b16 %v351, %v350
    %v363 = vpack.c.b16 %v353, %v352
    %v364 = vpack.c.b16 %v355, %v354
    %v365 = vpack.c.b16 %v357, %v356
    %374 = vmatprep.subr.bf16.mxu0 0
    %375 = vmatpush1.bf16.msra.mxu0 %v358
    %376 = vmatprep.subr.bf16.mxu0 0
    %377 = vmatpush1.bf16.msra.mxu0 %v359
    %378 = vmatprep.subr.bf16.mxu0 0
    %379 = vmatpush1.bf16.msra.mxu0 %v360
    %380 = vmatprep.subr.bf16.mxu0 0
    %381 = vmatpush1.bf16.msra.mxu0 %v361
    %382 = vmatprep.subr.bf16.mxu0 0
    %383 = vmatpush1.bf16.msra.mxu0 %v362
    %384 = vmatprep.subr.bf16.mxu0 0
    %385 = vmatpush1.bf16.msra.mxu0 %v363
    %386 = vmatprep.subr.bf16.mxu0 0
    %387 = vmatpush1.bf16.msra.mxu0 %v364
    %388 = vmatprep.subr.bf16.mxu0 0
    %389 = vmatpush1.bf16.msra.mxu0 %v365
    %390 = vmatprep.subr.bf16.mxu0 0
    %391 = vmatpush1.bf16.msra.mxu0 0
    %392 = vmatprep.subr.bf16.mxu0 0
    %393 = vmatpush1.bf16.msra.mxu0 0
    %394 = vmatprep.subr.bf16.mxu0 0
    %395 = vmatpush1.bf16.msra.mxu0 0
    %396 = vmatprep.subr.bf16.mxu0 0
    %397 = vmatpush1.bf16.msra.mxu0 0
    %398 = vmatprep.subr.bf16.mxu0 0
    %399 = vmatpush1.bf16.msra.mxu0 0
    %400 = vmatprep.subr.bf16.mxu0 0
    %401 = vmatpush1.bf16.msra.mxu0 0
    %402 = vmatprep.subr.bf16.mxu0 0
    %403 = vmatpush1.bf16.msra.mxu0 0
    %404 = vmatprep.subr.bf16.mxu0 0
    %405 = vmatpush1.bf16.msra.mxu0 0
    %406 = vmatprep.mubr.bf16.mxu0 0
    %407 = vmatmul.mubr.bf16.gmra.mrb[0].mxu0 %v309
    %v408 = vpop.f32.mrb[0].mxu0
    %v409 = vadd.f32 0.0, %v408
    %v410 = vpop.f32.mrb[0].mxu0
    %v411 = vpop.f32.mrb[0].mxu0
    %v412 = vadd.f32 0.0, %v411
    %v413 = vpop.f32.mrb[0].mxu0
    %414 = vdwg.mxu0
    %v415 = vadd.f32 %v303, %v409
    %v416 = vadd.f32 %v306, %v412
    %v417 = vld [vmem:[%s2] sm:$0x1]
    %v419 = vlaneseq
    %v420 = vshrl.u32 %v419, 7
    %v421 = vsub.s32 0, %v420
    %v422 = vrot.slane %v417, %v421
    %v424 = vadd.f32 %v415, %v422
    %v425 = vadd.f32 %v416, %v422
    %v426 = vmax.f32 %v424, 0.0
    %v427 = vmax.f32 %v425, 0.0
    %v428 = vrot.slane %v426, 7
    %v429 = vrot.slane %v427, 7
    %v430 = vsel %vm85, %v428, %v429
    %v431 = vsel %vm85, %v429, %v428
    %v432 = vsel %vm79, %v431, 0.0
    %v433 = vsel %vm80, %v430, 0.0
    %v434 = vrot.slane %v426, 1
    %v435 = vrot.slane %v427, 1
    %v436 = vsel %vm92, %v434, %v435
    %v437 = vsel %vm92, %v435, %v434
    %v438 = vsel %vm81, %v436, 0.0
    %v439 = vsel %vm82, %v437, 0.0
    %v440 = vpack.c.bf16 %v433, %v432
    %v441 = vld [vmem:[#allocation4] sm:$0xf]
    %v442 = vld [vmem:[#allocation4 + $0x4] sm:$0xf]
    %v443 = vld [vmem:[#allocation4 + $0x8] sm:$0xf]
    %v444 = vld [vmem:[#allocation4 + $0xc] sm:$0xf]
    %v445 = vld [vmem:[#allocation4 + $0x10] sm:$0xf]
    %v446 = vld [vmem:[#allocation4 + $0x14] sm:$0xf]
    %v447 = vld [vmem:[#allocation4 + $0x18] sm:$0xf]
    %v448 = vld [vmem:[#allocation4 + $0x1c] sm:$0xf]
    %v449 = vld [vmem:[#allocation4 + $0x20] sm:$0xf]
    %v450 = vld [vmem:[#allocation4 + $0x24] sm:$0xf]
    %v451 = vld [vmem:[#allocation4 + $0x28] sm:$0xf]
    %v452 = vld [vmem:[#allocation4 + $0x2c] sm:$0xf]
    %v453 = vld [vmem:[#allocation4 + $0x30] sm:$0xf]
    %v454 = vld [vmem:[#allocation4 + $0x34] sm:$0xf]
    %v455 = vld [vmem:[#allocation4 + $0x38] sm:$0xf]
    %v456 = vld [vmem:[#allocation4 + $0x3c] sm:$0xf]
    %v457 = vpack.c.bf16 %v427, %v426
    %v458 = vld [vmem:[#allocation4 + $0x40] sm:$0xf]
    %v459 = vld [vmem:[#allocation4 + $0x44] sm:$0xf]
    %v460 = vld [vmem:[#allocation4 + $0x48] sm:$0xf]
    %v461 = vld [vmem:[#allocation4 + $0x4c] sm:$0xf]
    %v462 = vld [vmem:[#allocation4 + $0x50] sm:$0xf]
    %v463 = vld [vmem:[#allocation4 + $0x54] sm:$0xf]
    %v464 = vld [vmem:[#allocation4 + $0x58] sm:$0xf]
    %v465 = vld [vmem:[#allocation4 + $0x5c] sm:$0xf]
    %v466 = vld [vmem:[#allocation4 + $0x60] sm:$0xf]
    %v467 = vld [vmem:[#allocation4 + $0x64] sm:$0xf]
    %v468 = vld [vmem:[#allocation4 + $0x68] sm:$0xf]
    %v469 = vld [vmem:[#allocation4 + $0x6c] sm:$0xf]
    %v470 = vld [vmem:[#allocation4 + $0x70] sm:$0xf]
    %v471 = vld [vmem:[#allocation4 + $0x74] sm:$0xf]
    %v472 = vld [vmem:[#allocation4 + $0x78] sm:$0xf]
    %v473 = vld [vmem:[#allocation4 + $0x7c] sm:$0xf]
    %v490 = vunpack.c.l.b16 %v458
    %v491 = vunpack.c.l.b16 %v459
    %v492 = vunpack.c.l.b16 %v460
    %v493 = vunpack.c.l.b16 %v461
    %v494 = vunpack.c.l.b16 %v462
    %v495 = vunpack.c.l.b16 %v463
    %v496 = vunpack.c.l.b16 %v464
    %v497 = vunpack.c.l.b16 %v465
    %v498 = vunpack.c.l.b16 %v466
    %v499 = vunpack.c.l.b16 %v467
    %v500 = vunpack.c.l.b16 %v468
    %v501 = vunpack.c.l.b16 %v469
    %v502 = vunpack.c.l.b16 %v470
    %v503 = vunpack.c.l.b16 %v471
    %v504 = vunpack.c.l.b16 %v472
    %v505 = vunpack.c.l.b16 %v473
    %v506 = vpack.c.b16 %v491, %v490
    %v507 = vpack.c.b16 %v493, %v492
    %v508 = vpack.c.b16 %v495, %v494
    %v509 = vpack.c.b16 %v497, %v496
    %v510 = vpack.c.b16 %v499, %v498
    %v511 = vpack.c.b16 %v501, %v500
    %v512 = vpack.c.b16 %v503, %v502
    %v513 = vpack.c.b16 %v505, %v504
    %522 = vmatprep.subr.bf16.mxu0 0
    %523 = vmatpush1.bf16.msra.mxu0 %v506
    %524 = vmatprep.subr.bf16.mxu0 0
    %525 = vmatpush1.bf16.msra.mxu0 %v507
    %526 = vmatprep.subr.bf16.mxu0 0
    %527 = vmatpush1.bf16.msra.mxu0 %v508
    %528 = vmatprep.subr.bf16.mxu0 0
    %529 = vmatpush1.bf16.msra.mxu0 %v509
    %530 = vmatprep.subr.bf16.mxu0 0
    %531 = vmatpush1.bf16.msra.mxu0 %v510
    %532 = vmatprep.subr.bf16.mxu0 0
    %533 = vmatpush1.bf16.msra.mxu0 %v511
    %534 = vmatprep.subr.bf16.mxu0 0
    %535 = vmatpush1.bf16.msra.mxu0 %v512
    %536 = vmatprep.subr.bf16.mxu0 0
    %537 = vmatpush1.bf16.msra.mxu0 %v513
    %538 = vmatprep.subr.bf16.mxu0 0
    %539 = vmatpush1.bf16.msra.mxu0 0
    %540 = vmatprep.subr.bf16.mxu0 0
    %541 = vmatpush1.bf16.msra.mxu0 0
    %542 = vmatprep.subr.bf16.mxu0 0
    %543 = vmatpush1.bf16.msra.mxu0 0
    %544 = vmatprep.subr.bf16.mxu0 0
    %545 = vmatpush1.bf16.msra.mxu0 0
    %546 = vmatprep.subr.bf16.mxu0 0
    %547 = vmatpush1.bf16.msra.mxu0 0
    %548 = vmatprep.subr.bf16.mxu0 0
    %549 = vmatpush1.bf16.msra.mxu0 0
    %550 = vmatprep.subr.bf16.mxu0 0
    %551 = vmatpush1.bf16.msra.mxu0 0
    %552 = vmatprep.subr.bf16.mxu0 0
    %553 = vmatpush1.bf16.msra.mxu0 0
    %554 = vmatprep.mubr.bf16.mxu0 0
    %555 = vmatmul.mubr.bf16.gmra.mrb[0].mxu0 %v457
    %v556 = vpop.f32.mrb[0].mxu0
    %v557 = vadd.f32 0.0, %v556
    %v558 = vpop.f32.mrb[0].mxu0
    %v559 = vpop.f32.mrb[0].mxu0
    %v560 = vadd.f32 0.0, %v559
    %v561 = vpop.f32.mrb[0].mxu0
    %562 = vdwg.mxu0
    %v579 = vunpack.c.l.b16 %v441
    %v580 = vunpack.c.l.b16 %v442
    %v581 = vunpack.c.l.b16 %v443
    %v582 = vunpack.c.l.b16 %v444
    %v583 = vunpack.c.l.b16 %v445
    %v584 = vunpack.c.l.b16 %v446
    %v585 = vunpack.c.l.b16 %v447
    %v586 = vunpack.c.l.b16 %v448
    %v587 = vunpack.c.l.b16 %v449
    %v588 = vunpack.c.l.b16 %v450
    %v589 = vunpack.c.l.b16 %v451
    %v590 = vunpack.c.l.b16 %v452
    %v591 = vunpack.c.l.b16 %v453
    %v592 = vunpack.c.l.b16 %v454
    %v593 = vunpack.c.l.b16 %v455
    %v594 = vunpack.c.l.b16 %v456
    %v595 = vpack.c.b16 %v580, %v579
    %v596 = vpack.c.b16 %v582, %v581
    %v597 = vpack.c.b16 %v584, %v583
    %v598 = vpack.c.b16 %v586, %v585
    %v599 = vpack.c.b16 %v588, %v587
    %v600 = vpack.c.b16 %v590, %v589
    %v601 = vpack.c.b16 %v592, %v591
    %v602 = vpack.c.b16 %v594, %v593
    %611 = vmatprep.subr.bf16.mxu0 0
    %612 = vmatpush1.bf16.msra.mxu0 %v595
    %613 = vmatprep.subr.bf16.mxu0 0
    %614 = vmatpush1.bf16.msra.mxu0 %v596
    %615 = vmatprep.subr.bf16.mxu0 0
    %616 = vmatpush1.bf16.msra.mxu0 %v597
    %617 = vmatprep.subr.bf16.mxu0 0
    %618 = vmatpush1.bf16.msra.mxu0 %v598
    %619 = vmatprep.subr.bf16.mxu0 0
    %620 = vmatpush1.bf16.msra.mxu0 %v599
    %621 = vmatprep.subr.bf16.mxu0 0
    %622 = vmatpush1.bf16.msra.mxu0 %v600
    %623 = vmatprep.subr.bf16.mxu0 0
    %624 = vmatpush1.bf16.msra.mxu0 %v601
    %625 = vmatprep.subr.bf16.mxu0 0
    %626 = vmatpush1.bf16.msra.mxu0 %v602
    %627 = vmatprep.subr.bf16.mxu0 0
    %628 = vmatpush1.bf16.msra.mxu0 0
    %629 = vmatprep.subr.bf16.mxu0 0
    %630 = vmatpush1.bf16.msra.mxu0 0
    %631 = vmatprep.subr.bf16.mxu0 0
    %632 = vmatpush1.bf16.msra.mxu0 0
    %633 = vmatprep.subr.bf16.mxu0 0
    %634 = vmatpush1.bf16.msra.mxu0 0
    %635 = vmatprep.subr.bf16.mxu0 0
    %636 = vmatpush1.bf16.msra.mxu0 0
    %637 = vmatprep.subr.bf16.mxu0 0
    %638 = vmatpush1.bf16.msra.mxu0 0
    %639 = vmatprep.subr.bf16.mxu0 0
    %640 = vmatpush1.bf16.msra.mxu0 0
    %641 = vmatprep.subr.bf16.mxu0 0
    %642 = vmatpush1.bf16.msra.mxu0 0
    %643 = vmatprep.mubr.bf16.mxu0 0
    %644 = vmatmul.mubr.bf16.gmra.mrb[0].mxu0 %v440
    %v645 = vpop.f32.mrb[0].mxu0
    %v646 = vadd.f32 %v557, %v645
    %v647 = vpop.f32.mrb[0].mxu0
    %v648 = vpop.f32.mrb[0].mxu0
    %v649 = vadd.f32 %v560, %v648
    %v650 = vpop.f32.mrb[0].mxu0
    %651 = vdwg.mxu0
    %v652 = vpack.c.bf16 %v439, %v438
    %v653 = vld [vmem:[#allocation4 + $0x80] sm:$0xf]
    %v654 = vld [vmem:[#allocation4 + $0x84] sm:$0xf]
    %v655 = vld [vmem:[#allocation4 + $0x88] sm:$0xf]
    %v656 = vld [vmem:[#allocation4 + $0x8c] sm:$0xf]
    %v657 = vld [vmem:[#allocation4 + $0x90] sm:$0xf]
    %v658 = vld [vmem:[#allocation4 + $0x94] sm:$0xf]
    %v659 = vld [vmem:[#allocation4 + $0x98] sm:$0xf]
    %v660 = vld [vmem:[#allocation4 + $0x9c] sm:$0xf]
    %v661 = vld [vmem:[#allocation4 + $0xa0] sm:$0xf]
    %v662 = vld [vmem:[#allocation4 + $0xa4] sm:$0xf]
    %v663 = vld [vmem:[#allocation4 + $0xa8] sm:$0xf]
    %v664 = vld [vmem:[#allocation4 + $0xac] sm:$0xf]
    %v665 = vld [vmem:[#allocation4 + $0xb0] sm:$0xf]
    %v666 = vld [vmem:[#allocation4 + $0xb4] sm:$0xf]
    %v667 = vld [vmem:[#allocation4 + $0xb8] sm:$0xf]
    %v668 = vld [vmem:[#allocation4 + $0xbc] sm:$0xf]
    %v685 = vunpack.c.l.b16 %v653
    %v686 = vunpack.c.l.b16 %v654
    %v687 = vunpack.c.l.b16 %v655
    %v688 = vunpack.c.l.b16 %v656
    %v689 = vunpack.c.l.b16 %v657
    %v690 = vunpack.c.l.b16 %v658
    %v691 = vunpack.c.l.b16 %v659
    %v692 = vunpack.c.l.b16 %v660
    %v693 = vunpack.c.l.b16 %v661
    %v694 = vunpack.c.l.b16 %v662
    %v695 = vunpack.c.l.b16 %v663
    %v696 = vunpack.c.l.b16 %v664
    %v697 = vunpack.c.l.b16 %v665
    %v698 = vunpack.c.l.b16 %v666
    %v699 = vunpack.c.l.b16 %v667
    %v700 = vunpack.c.l.b16 %v668
    %v701 = vpack.c.b16 %v686, %v685
    %v702 = vpack.c.b16 %v688, %v687
    %v703 = vpack.c.b16 %v690, %v689
    %v704 = vpack.c.b16 %v692, %v691
    %v705 = vpack.c.b16 %v694, %v693
    %v706 = vpack.c.b16 %v696, %v695
    %v707 = vpack.c.b16 %v698, %v697
    %v708 = vpack.c.b16 %v700, %v699
    %717 = vmatprep.subr.bf16.mxu0 0
    %718 = vmatpush1.bf16.msra.mxu0 %v701
    %719 = vmatprep.subr.bf16.mxu0 0
    %720 = vmatpush1.bf16.msra.mxu0 %v702
    %721 = vmatprep.subr.bf16.mxu0 0
    %722 = vmatpush1.bf16.msra.mxu0 %v703
    %723 = vmatprep.subr.bf16.mxu0 0
    %724 = vmatpush1.bf16.msra.mxu0 %v704
    %725 = vmatprep.subr.bf16.mxu0 0
    %726 = vmatpush1.bf16.msra.mxu0 %v705
    %727 = vmatprep.subr.bf16.mxu0 0
    %728 = vmatpush1.bf16.msra.mxu0 %v706
    %729 = vmatprep.subr.bf16.mxu0 0
    %730 = vmatpush1.bf16.msra.mxu0 %v707
    %731 = vmatprep.subr.bf16.mxu0 0
    %732 = vmatpush1.bf16.msra.mxu0 %v708
    %733 = vmatprep.subr.bf16.mxu0 0
    %734 = vmatpush1.bf16.msra.mxu0 0
    %735 = vmatprep.subr.bf16.mxu0 0
    %736 = vmatpush1.bf16.msra.mxu0 0
    %737 = vmatprep.subr.bf16.mxu0 0
    %738 = vmatpush1.bf16.msra.mxu0 0
    %739 = vmatprep.subr.bf16.mxu0 0
    %740 = vmatpush1.bf16.msra.mxu0 0
    %741 = vmatprep.subr.bf16.mxu0 0
    %742 = vmatpush1.bf16.msra.mxu0 0
    %743 = vmatprep.subr.bf16.mxu0 0
    %744 = vmatpush1.bf16.msra.mxu0 0
    %745 = vmatprep.subr.bf16.mxu0 0
    %746 = vmatpush1.bf16.msra.mxu0 0
    %747 = vmatprep.subr.bf16.mxu0 0
    %748 = vmatpush1.bf16.msra.mxu0 0
    %749 = vmatprep.mubr.bf16.mxu0 0
    %750 = vmatmul.mubr.bf16.gmra.mrb[0].mxu0 %v652
    %v751 = vpop.f32.mrb[0].mxu0
    %v752 = vadd.f32 0.0, %v751
    %v753 = vpop.f32.mrb[0].mxu0
    %v754 = vpop.f32.mrb[0].mxu0
    %v755 = vadd.f32 0.0, %v754
    %v756 = vpop.f32.mrb[0].mxu0
    %757 = vdwg.mxu0
    %v758 = vadd.f32 %v646, %v752
    %v759 = vadd.f32 %v649, %v755
    %v760 = vld [vmem:[%s4] sm:$0x1]
    %v762 = vlaneseq
    %v763 = vshrl.u32 %v762, 7
    %v764 = vsub.s32 0, %v763
    %v765 = vrot.slane %v760, %v764
    %v767 = vadd.f32 %v758, %v765
    %v768 = vadd.f32 %v759, %v765
    %v769 = vmax.f32 %v767, 0.0
    %v770 = vmax.f32 %v768, 0.0
    %v771 = vrot.slane %v769, 7
    %v772 = vrot.slane %v770, 7
    %v773 = vsel %vm85, %v771, %v772
    %v774 = vsel %vm85, %v772, %v771
    %v775 = vsel %vm79, %v774, 0.0
    %v776 = vsel %vm80, %v773, 0.0
    %v777 = vrot.slane %v769, 1
    %v778 = vrot.slane %v770, 1
    %v779 = vsel %vm92, %v777, %v778
    %v780 = vsel %vm92, %v778, %v777
    %v781 = vsel %vm81, %v779, 0.0
    %v782 = vsel %vm82, %v780, 0.0
    %v783 = vpack.c.bf16 %v776, %v775
    %v784 = vld [vmem:[#allocation6] sm:$0xf]
    %v785 = vld [vmem:[#allocation6 + $0x4] sm:$0xf]
    %v786 = vld [vmem:[#allocation6 + $0x8] sm:$0xf]
    %v787 = vld [vmem:[#allocation6 + $0xc] sm:$0xf]
    %v788 = vld [vmem:[#allocation6 + $0x10] sm:$0xf]
    %v789 = vld [vmem:[#allocation6 + $0x14] sm:$0xf]
    %v790 = vld [vmem:[#allocation6 + $0x18] sm:$0xf]
    %v791 = vld [vmem:[#allocation6 + $0x1c] sm:$0xf]
    %v792 = vld [vmem:[#allocation6 + $0x20] sm:$0xf]
    %v793 = vld [vmem:[#allocation6 + $0x24] sm:$0xf]
    %v794 = vld [vmem:[#allocation6 + $0x28] sm:$0xf]
    %v795 = vld [vmem:[#allocation6 + $0x2c] sm:$0xf]
    %v796 = vld [vmem:[#allocation6 + $0x30] sm:$0xf]
    %v797 = vld [vmem:[#allocation6 + $0x34] sm:$0xf]
    %v798 = vld [vmem:[#allocation6 + $0x38] sm:$0xf]
    %v799 = vld [vmem:[#allocation6 + $0x3c] sm:$0xf]
    %v800 = vpack.c.bf16 %v770, %v769
    %v801 = vld [vmem:[#allocation6 + $0x40] sm:$0xf]
    %v802 = vld [vmem:[#allocation6 + $0x44] sm:$0xf]
    %v803 = vld [vmem:[#allocation6 + $0x48] sm:$0xf]
    %v804 = vld [vmem:[#allocation6 + $0x4c] sm:$0xf]
    %v805 = vld [vmem:[#allocation6 + $0x50] sm:$0xf]
    %v806 = vld [vmem:[#allocation6 + $0x54] sm:$0xf]
    %v807 = vld [vmem:[#allocation6 + $0x58] sm:$0xf]
    %v808 = vld [vmem:[#allocation6 + $0x5c] sm:$0xf]
    %v809 = vld [vmem:[#allocation6 + $0x60] sm:$0xf]
    %v810 = vld [vmem:[#allocation6 + $0x64] sm:$0xf]
    %v811 = vld [vmem:[#allocation6 + $0x68] sm:$0xf]
    %v812 = vld [vmem:[#allocation6 + $0x6c] sm:$0xf]
    %v813 = vld [vmem:[#allocation6 + $0x70] sm:$0xf]
    %v814 = vld [vmem:[#allocation6 + $0x74] sm:$0xf]
    %v815 = vld [vmem:[#allocation6 + $0x78] sm:$0xf]
    %v816 = vld [vmem:[#allocation6 + $0x7c] sm:$0xf]
    %v833 = vunpack.c.l.b16 %v801
    %v834 = vunpack.c.l.b16 %v802
    %v835 = vunpack.c.l.b16 %v803
    %v836 = vunpack.c.l.b16 %v804
    %v837 = vunpack.c.l.b16 %v805
    %v838 = vunpack.c.l.b16 %v806
    %v839 = vunpack.c.l.b16 %v807
    %v840 = vunpack.c.l.b16 %v808
    %v841 = vunpack.c.l.b16 %v809
    %v842 = vunpack.c.l.b16 %v810
    %v843 = vunpack.c.l.b16 %v811
    %v844 = vunpack.c.l.b16 %v812
    %v845 = vunpack.c.l.b16 %v813
    %v846 = vunpack.c.l.b16 %v814
    %v847 = vunpack.c.l.b16 %v815
    %v848 = vunpack.c.l.b16 %v816
    %v849 = vpack.c.b16 %v834, %v833
    %v850 = vpack.c.b16 %v836, %v835
    %v851 = vpack.c.b16 %v838, %v837
    %v852 = vpack.c.b16 %v840, %v839
    %v853 = vpack.c.b16 %v842, %v841
    %v854 = vpack.c.b16 %v844, %v843
    %v855 = vpack.c.b16 %v846, %v845
    %v856 = vpack.c.b16 %v848, %v847
    %865 = vmatprep.subr.bf16.mxu0 0
    %866 = vmatpush1.bf16.msra.mxu0 %v849
    %867 = vmatprep.subr.bf16.mxu0 0
    %868 = vmatpush1.bf16.msra.mxu0 %v850
    %869 = vmatprep.subr.bf16.mxu0 0
    %870 = vmatpush1.bf16.msra.mxu0 %v851
    %871 = vmatprep.subr.bf16.mxu0 0
    %872 = vmatpush1.bf16.msra.mxu0 %v852
    %873 = vmatprep.subr.bf16.mxu0 0
    %874 = vmatpush1.bf16.msra.mxu0 %v853
    %875 = vmatprep.subr.bf16.mxu0 0
    %876 = vmatpush1.bf16.msra.mxu0 %v854
    %877 = vmatprep.subr.bf16.mxu0 0
    %878 = vmatpush1.bf16.msra.mxu0 %v855
    %879 = vmatprep.subr.bf16.mxu0 0
    %880 = vmatpush1.bf16.msra.mxu0 %v856
    %881 = vmatprep.subr.bf16.mxu0 0
    %882 = vmatpush1.bf16.msra.mxu0 0
    %883 = vmatprep.subr.bf16.mxu0 0
    %884 = vmatpush1.bf16.msra.mxu0 0
    %885 = vmatprep.subr.bf16.mxu0 0
    %886 = vmatpush1.bf16.msra.mxu0 0
    %887 = vmatprep.subr.bf16.mxu0 0
    %888 = vmatpush1.bf16.msra.mxu0 0
    %889 = vmatprep.subr.bf16.mxu0 0
    %890 = vmatpush1.bf16.msra.mxu0 0
    %891 = vmatprep.subr.bf16.mxu0 0
    %892 = vmatpush1.bf16.msra.mxu0 0
    %893 = vmatprep.subr.bf16.mxu0 0
    %894 = vmatpush1.bf16.msra.mxu0 0
    %895 = vmatprep.subr.bf16.mxu0 0
    %896 = vmatpush1.bf16.msra.mxu0 0
    %897 = vmatprep.mubr.bf16.mxu0 0
    %898 = vmatmul.mubr.bf16.gmra.mrb[0].mxu0 %v800
    %v899 = vpop.f32.mrb[0].mxu0
    %v900 = vadd.f32 0.0, %v899
    %v901 = vpop.f32.mrb[0].mxu0
    %v902 = vpop.f32.mrb[0].mxu0
    %v903 = vadd.f32 0.0, %v902
    %v904 = vpop.f32.mrb[0].mxu0
    %905 = vdwg.mxu0
    %v922 = vunpack.c.l.b16 %v784
    %v923 = vunpack.c.l.b16 %v785
    %v924 = vunpack.c.l.b16 %v786
    %v925 = vunpack.c.l.b16 %v787
    %v926 = vunpack.c.l.b16 %v788
    %v927 = vunpack.c.l.b16 %v789
    %v928 = vunpack.c.l.b16 %v790
    %v929 = vunpack.c.l.b16 %v791
    %v930 = vunpack.c.l.b16 %v792
    %v931 = vunpack.c.l.b16 %v793
    %v932 = vunpack.c.l.b16 %v794
    %v933 = vunpack.c.l.b16 %v795
    %v934 = vunpack.c.l.b16 %v796
    %v935 = vunpack.c.l.b16 %v797
    %v936 = vunpack.c.l.b16 %v798
    %v937 = vunpack.c.l.b16 %v799
    %v938 = vpack.c.b16 %v923, %v922
    %v939 = vpack.c.b16 %v925, %v924
    %v940 = vpack.c.b16 %v927, %v926
    %v941 = vpack.c.b16 %v929, %v928
    %v942 = vpack.c.b16 %v931, %v930
    %v943 = vpack.c.b16 %v933, %v932
    %v944 = vpack.c.b16 %v935, %v934
    %v945 = vpack.c.b16 %v937, %v936
    %954 = vmatprep.subr.bf16.mxu0 0
    %955 = vmatpush1.bf16.msra.mxu0 %v938
    %956 = vmatprep.subr.bf16.mxu0 0
    %957 = vmatpush1.bf16.msra.mxu0 %v939
    %958 = vmatprep.subr.bf16.mxu0 0
    %959 = vmatpush1.bf16.msra.mxu0 %v940
    %960 = vmatprep.subr.bf16.mxu0 0
    %961 = vmatpush1.bf16.msra.mxu0 %v941
    %962 = vmatprep.subr.bf16.mxu0 0
    %963 = vmatpush1.bf16.msra.mxu0 %v942
    %964 = vmatprep.subr.bf16.mxu0 0
    %965 = vmatpush1.bf16.msra.mxu0 %v943
    %966 = vmatprep.subr.bf16.mxu0 0
    %967 = vmatpush1.bf16.msra.mxu0 %v944
    %968 = vmatprep.subr.bf16.mxu0 0
    %969 = vmatpush1.bf16.msra.mxu0 %v945
    %970 = vmatprep.subr.bf16.mxu0 0
    %971 = vmatpush1.bf16.msra.mxu0 0
    %972 = vmatprep.subr.bf16.mxu0 0
    %973 = vmatpush1.bf16.msra.mxu0 0
    %974 = vmatprep.subr.bf16.mxu0 0
    %975 = vmatpush1.bf16.msra.mxu0 0
    %976 = vmatprep.subr.bf16.mxu0 0
    %977 = vmatpush1.bf16.msra.mxu0 0
    %978 = vmatprep.subr.bf16.mxu0 0
    %979 = vmatpush1.bf16.msra.mxu0 0
    %980 = vmatprep.subr.bf16.mxu0 0
    %981 = vmatpush1.bf16.msra.mxu0 0
    %982 = vmatprep.subr.bf16.mxu0 0
    %983 = vmatpush1.bf16.msra.mxu0 0
    %984 = vmatprep.subr.bf16.mxu0 0
    %985 = vmatpush1.bf16.msra.mxu0 0
    %986 = vmatprep.mubr.bf16.mxu0 0
    %987 = vmatmul.mubr.bf16.gmra.mrb[0].mxu0 %v783
    %v988 = vpop.f32.mrb[0].mxu0
    %v989 = vadd.f32 %v900, %v988
    %v990 = vpop.f32.mrb[0].mxu0
    %v991 = vpop.f32.mrb[0].mxu0
    %v992 = vadd.f32 %v903, %v991
    %v993 = vpop.f32.mrb[0].mxu0
    %994 = vdwg.mxu0
    %v995 = vpack.c.bf16 %v782, %v781
    %v996 = vld [vmem:[#allocation6 + $0x80] sm:$0xf]
    %v997 = vld [vmem:[#allocation6 + $0x84] sm:$0xf]
    %v998 = vld [vmem:[#allocation6 + $0x88] sm:$0xf]
    %v999 = vld [vmem:[#allocation6 + $0x8c] sm:$0xf]
    %v1000 = vld [vmem:[#allocation6 + $0x90] sm:$0xf]
    %v1001 = vld [vmem:[#allocation6 + $0x94] sm:$0xf]
    %v1002 = vld [vmem:[#allocation6 + $0x98] sm:$0xf]
    %v1003 = vld [vmem:[#allocation6 + $0x9c] sm:$0xf]
    %v1004 = vld [vmem:[#allocation6 + $0xa0] sm:$0xf]
    %v1005 = vld [vmem:[#allocation6 + $0xa4] sm:$0xf]
    %v1006 = vld [vmem:[#allocation6 + $0xa8] sm:$0xf]
    %v1007 = vld [vmem:[#allocation6 + $0xac] sm:$0xf]
    %v1008 = vld [vmem:[#allocation6 + $0xb0] sm:$0xf]
    %v1009 = vld [vmem:[#allocation6 + $0xb4] sm:$0xf]
    %v1010 = vld [vmem:[#allocation6 + $0xb8] sm:$0xf]
    %v1011 = vld [vmem:[#allocation6 + $0xbc] sm:$0xf]
    %v1028 = vunpack.c.l.b16 %v996
    %v1029 = vunpack.c.l.b16 %v997
    %v1030 = vunpack.c.l.b16 %v998
    %v1031 = vunpack.c.l.b16 %v999
    %v1032 = vunpack.c.l.b16 %v1000
    %v1033 = vunpack.c.l.b16 %v1001
    %v1034 = vunpack.c.l.b16 %v1002
    %v1035 = vunpack.c.l.b16 %v1003
    %v1036 = vunpack.c.l.b16 %v1004
    %v1037 = vunpack.c.l.b16 %v1005
    %v1038 = vunpack.c.l.b16 %v1006
    %v1039 = vunpack.c.l.b16 %v1007
    %v1040 = vunpack.c.l.b16 %v1008
    %v1041 = vunpack.c.l.b16 %v1009
    %v1042 = vunpack.c.l.b16 %v1010
    %v1043 = vunpack.c.l.b16 %v1011
    %v1044 = vpack.c.b16 %v1029, %v1028
    %v1045 = vpack.c.b16 %v1031, %v1030
    %v1046 = vpack.c.b16 %v1033, %v1032
    %v1047 = vpack.c.b16 %v1035, %v1034
    %v1048 = vpack.c.b16 %v1037, %v1036
    %v1049 = vpack.c.b16 %v1039, %v1038
    %v1050 = vpack.c.b16 %v1041, %v1040
    %v1051 = vpack.c.b16 %v1043, %v1042
    %1060 = vmatprep.subr.bf16.mxu0 0
    %1061 = vmatpush1.bf16.msra.mxu0 %v1044
    %1062 = vmatprep.subr.bf16.mxu0 0
    %1063 = vmatpush1.bf16.msra.mxu0 %v1045
    %1064 = vmatprep.subr.bf16.mxu0 0
    %1065 = vmatpush1.bf16.msra.mxu0 %v1046
    %1066 = vmatprep.subr.bf16.mxu0 0
    %1067 = vmatpush1.bf16.msra.mxu0 %v1047
    %1068 = vmatprep.subr.bf16.mxu0 0
    %1069 = vmatpush1.bf16.msra.mxu0 %v1048
    %1070 = vmatprep.subr.bf16.mxu0 0
    %1071 = vmatpush1.bf16.msra.mxu0 %v1049
    %1072 = vmatprep.subr.bf16.mxu0 0
    %1073 = vmatpush1.bf16.msra.mxu0 %v1050
    %1074 = vmatprep.subr.bf16.mxu0 0
    %1075 = vmatpush1.bf16.msra.mxu0 %v1051
    %1076 = vmatprep.subr.bf16.mxu0 0
    %1077 = vmatpush1.bf16.msra.mxu0 0
    %1078 = vmatprep.subr.bf16.mxu0 0
    %1079 = vmatpush1.bf16.msra.mxu0 0
    %1080 = vmatprep.subr.bf16.mxu0 0
    %1081 = vmatpush1.bf16.msra.mxu0 0
    %1082 = vmatprep.subr.bf16.mxu0 0
    %1083 = vmatpush1.bf16.msra.mxu0 0
    %1084 = vmatprep.subr.bf16.mxu0 0
    %1085 = vmatpush1.bf16.msra.mxu0 0
    %1086 = vmatprep.subr.bf16.mxu0 0
    %1087 = vmatpush1.bf16.msra.mxu0 0
    %1088 = vmatprep.subr.bf16.mxu0 0
    %1089 = vmatpush1.bf16.msra.mxu0 0
    %1090 = vmatprep.subr.bf16.mxu0 0
    %1091 = vmatpush1.bf16.msra.mxu0 0
    %1092 = vmatprep.mubr.bf16.mxu0 0
    %1093 = vmatmul.mubr.bf16.gmra.mrb[0].mxu0 %v995
    %v1094 = vpop.f32.mrb[0].mxu0
    %v1095 = vadd.f32 0.0, %v1094
    %v1096 = vpop.f32.mrb[0].mxu0
    %v1097 = vpop.f32.mrb[0].mxu0
    %v1098 = vadd.f32 0.0, %v1097
    %v1099 = vpop.f32.mrb[0].mxu0
    %1100 = vdwg.mxu0
    %v1101 = vadd.f32 %v989, %v1095
    %v1102 = vadd.f32 %v992, %v1098
    %v1103 = vld [vmem:[%s6] sm:$0x1]
    %v1105 = vlaneseq
    %v1106 = vshrl.u32 %v1105, 7
    %v1107 = vsub.s32 0, %v1106
    %v1108 = vrot.slane %v1103, %v1107
    %v1110 = vadd.f32 %v1101, %v1108
    %v1111 = vadd.f32 %v1102, %v1108
    %v1112 = vadd.f32 %v1110, %v1111
    %v1113 = vrot.slane %v1112, 4
    %v1114 = vadd.f32 %v1112, %v1113
    %v1115 = vrot.slane %v1114, 2
    %v1116 = vadd.f32 %v1114, %v1115
    %v1117 = vrot.slane %v1116, 1
    %v1118 = vadd.f32 %v1116, %v1117
    %v1119 = vrcp.pop 16.0
    %v1120 = vmul.f32 %v1118, %v1119
    %v1121 = vsub.f32 %v1110, %v1120
    %v1122 = vsub.f32 %v1111, %v1120
    %v1123 = vmul.f32 %v1121, %v1121
    %v1124 = vmul.f32 %v1122, %v1122
    %v1125 = vadd.f32 %v1123, %v1124
    %v1126 = vrot.slane %v1125, 4
    %v1127 = vadd.f32 %v1125, %v1126
    %v1128 = vrot.slane %v1127, 2
    %v1129 = vadd.f32 %v1127, %v1128
    %v1130 = vrot.slane %v1129, 1
    %v1131 = vadd.f32 %v1129, %v1130
    %v1132 = vmul.f32 %v1131, %v1119
    %v1133 = vadd.f32 %v1132, 1e-05
    %v1134 = vrsqrt.pop %v1133
    %v1135 = vmul.f32 %v1121, %v1134
    %v1136 = vmul.f32 %v1122, %v1134
    %v1137 = vld [vmem:[%s7] sm:$0xff]
    %v1138 = vld [vmem:[%s7 + $0x8] sm:$0xff]
    %v1139 = vmul.f32 %v1135, %v1137
    %v1140 = vmul.f32 %v1136, %v1138
    %v1141 = vld [vmem:[%s8] sm:$0xff]
    %v1142 = vld [vmem:[%s8 + $0x8] sm:$0xff]
    %v1143 = vadd.f32 %v1139, %v1141
    %v1144 = vadd.f32 %v1140, %v1142
    %v1145 = vmax.f32 %v1143, 0.0
    %v1146 = vmax.f32 %v1144, 0.0
    %v1147 = vadd.f32 %v1145, %v74
    %v1148 = vadd.f32 %v1146, %v75
    %1149 = vst [vmem:[%s9] sm:$0xff] %v1147
    %1150 = vst [vmem:[%s9 + $0x8] sm:$0xff] %v1148
    // Predicated region
    $region50: #{conv_block_pallas.1} parent=1 // pred_check
      _
    $region51: #{conv_block_pallas.1} parent=1 // pred_check_branch
      %1152 = sbr.rel (0) target = $region53
    $region52: #{conv_block_pallas.1} parent=1 // pred_region
      _
    $region53: #{conv_block_pallas.1} parent=1 // pred_fallthru
      _
    // Predicated region
    $region54: #{conv_block_pallas.1} parent=1 // pred_check
      _
    $region55: #{conv_block_pallas.1} parent=1 // pred_check_branch
      %1154 = sbr.rel (0) target = $region57
    $region56: #{conv_block_pallas.1} parent=1 // pred_region
      _
    $region57: #{conv_block_pallas.1} parent=1 // pred_fallthru
      _
    %1155 = vsyncpa [#allocation3], 1
    %1156 = vsyncpa [#allocation5], 1

</llo_original>
